<compile_context>
chip_gen: v7x
topology: tpu7x:2x2x1
jax: 0.10.0
libtpu: 0.0.40
codegen_flags: <defaults>
</compile_context>

<pallas_src>
import math

import jax
import jax.numpy as jnp
from jax.experimental import pallas as pl
from jax.experimental.pallas import tpu as pltpu


_LN2 = math.log(2.0)

# Lane widths tried in order (multiples of 128); picking one that divides n
# keeps the wrapper reshape a zero-copy bitcast (no padded copy of the inputs).
_LANE_CHOICES = (1024, 512, 256, 128)

# ~2 MiB of f32 per input block.
_BLOCK_ELEMS = (2 * 1024 * 1024) // 4

# Leading "parallel" grid axis width: on v7x Mosaic shards it across the two
# TensorCores; on v5e/v6e it simply runs sequentially with negligible overhead.
_CORE_SPLIT = 2


def _cdiv(a, b):
    return (a + b - 1) // b


def _make_bce_sum_kernel(pw_m1, tile_r, acc_rows, lanes, tiles_per_core,
                         full_tiles, valid_rows_last, grid_tiles):
    """BCE-with-logits partial-sum kernel (all sizes are static Python ints)."""
    groups = tile_r // acc_rows
    has_partial = valid_rows_last > 0
    n_real_tiles = full_tiles + (1 if has_partial else 0)
    # Fast path: every grid step is a full, valid tile -> no branches at all.
    simple = (not has_partial) and (grid_tiles == n_real_tiles)

    def kernel(x_ref, y_ref, o_ref):
        i = pl.program_id(1)

        @pl.when(i == 0)
        def _():
            o_ref[...] = jnp.zeros_like(o_ref)

        x = x_ref[...].astype(jnp.float32)
        y = y_ref[...].astype(jnp.float32)

        # PyTorch's numerically stable BCEWithLogitsLoss with pos_weight:
        #   log_weight = 1 + (pos_weight - 1) * target
        #   loss = (1 - target) * input
        #          + log_weight * (log1p(exp(-|input|)) + max(-input, 0))
        log_weight = 1.0 + pw_m1 * y
        per_elem = (1.0 - y) * x + log_weight * (
            jnp.log1p(jnp.exp(-jnp.abs(x))) + jnp.maximum(-x, 0.0)
        )

        def accumulate(vals):
            # Fold sublane groups with pure VPU adds into the lane-dense
            # (acc_rows, lanes) output block; no per-step cross-lane XLU work.
            o_ref[...] += vals.reshape(groups, acc_rows, lanes).sum(axis=0)

        if simple:
            accumulate(per_elem)
        else:
            t = pl.program_id(0) * tiles_per_core + i   # global tile id

            @pl.when(t < full_tiles)
            def _():
                accumulate(per_elem)

            if has_partial:
                # Only the single ragged tile pays for mask construction; the
                # row index is per-tile, so no int32 overflow on huge inputs.
                @pl.when(t == full_tiles)
                def _():
                    row = jax.lax.broadcasted_iota(
                        jnp.int32, (tile_r, lanes), 0)
                    accumulate(jnp.where(row < valid_rows_last, per_elem, 0.0))
            # t > last real tile (phantom trailing step): contributes nothing.

    return kernel


def simple_loss(ypred, ytgt, pos_weight, *,
                block_elems=_BLOCK_ELEMS,
                lane_choices=_LANE_CHOICES,
                core_split=_CORE_SPLIT):
    """BCEWithLogitsLoss(pos_weight=pos_weight)(ypred, ytgt), 'mean' reduction."""
    assert ypred.shape == ytgt.shape
    n = int(ypred.size)
    # pos_weight is a static constructor argument in the reference module, so
    # close over (pos_weight - 1) as a compile-time constant.
    pw_m1 = float(pos_weight) - 1.0

    x_flat = ypred.reshape(-1)
    y_flat = ytgt.reshape(-1)

    lanes = next((L for L in lane_choices if n % L == 0), None)
    pad = 0
    if lanes is None:
        # Rare fallback (n has no multiple-of-128 divisor): pad the flat
        # arrays; each zero-padded element (x=0, y=0) adds exactly ln(2),
        # removed analytically below -> kernel never needs an element mask.
        lanes = 128
        pad = _cdiv(n, lanes) * lanes - n
        x_flat = jnp.pad(x_flat, (0, pad))
        y_flat = jnp.pad(y_flat, (0, pad))
    rows = (n + pad) // lanes
    x2d = x_flat.reshape(rows, lanes)   # zero-copy when pad == 0
    y2d = y_flat.reshape(rows, lanes)

    # Row tiling: ~block_elems elements per input block, tile height mult of 8.
    max_rows = max(8, (block_elems // lanes) // 8 * 8)
    tile_r = rows if rows <= max_rows else max_rows
    full_tiles = rows // tile_r
    valid_rows_last = rows - full_tiles * tile_r           # 0 -> no ragged tile
    n_real_tiles = full_tiles + (1 if valid_rows_last else 0)

    split = core_split if n_real_tiles >= core_split else 1
    tiles_per_core = _cdiv(n_real_tiles, split)
    grid_tiles = split * tiles_per_core       # may exceed n_real_tiles by < split

    acc_rows = 8 if tile_r % 8 == 0 else tile_r            # tiny single-tile case

    kernel = _make_bce_sum_kernel(pw_m1, tile_r, acc_rows, lanes,
                                  tiles_per_core, full_tiles,
                                  valid_rows_last, grid_tiles)

    if grid_tiles > n_real_tiles:
        def in_index_map(c, i):
            # Clamp phantom trailing steps onto the last real tile; the kernel
            # skips their accumulation.
            return (jnp.minimum(c * tiles_per_core + i, n_real_tiles - 1), 0)
    else:
        def in_index_map(c, i):
            return (c * tiles_per_core + i, 0)

    cost = pl.CostEstimate(
        flops=12 * rows * lanes,
        transcendentals=2 * rows * lanes,
        bytes_accessed=(x2d.size * x2d.dtype.itemsize
                        + y2d.size * y2d.dtype.itemsize
                        + split * acc_rows * lanes * 4),
    )

    partials = pl.pallas_call(
        kernel,
        out_shape=jax.ShapeDtypeStruct((split, acc_rows, lanes), jnp.float32),
        grid=(split, tiles_per_core),
        in_specs=[
            pl.BlockSpec((tile_r, lanes), in_index_map),    # logits tile
            pl.BlockSpec((tile_r, lanes), in_index_map),    # targets tile
        ],
        # Per-core lane-dense accumulator block, resident across the inner axis.
        out_specs=pl.BlockSpec((None, acc_rows, lanes), lambda c, i: (c, 0, 0)),
        compiler_params=pltpu.CompilerParams(
            dimension_semantics=("parallel", "arbitrary"),
        ),
        cost_estimate=cost,
    )(x2d, y2d)

    total = jnp.sum(partials)
    if pad:
        # Zero-padded elements (x=0, y=0) each contribute exactly ln(2).
        total = total - jnp.float32(pad * _LN2)
    return total / jnp.float32(n)


def _simple_loss_ref(ypred, ytgt, pos_weight):
    x = ypred.astype(jnp.float32)
    y = ytgt.astype(jnp.float32)
    log_weight = 1.0 + (pos_weight - 1.0) * y
    per_elem = (1.0 - y) * x + log_weight * (
        jnp.log1p(jnp.exp(-jnp.abs(x))) + jnp.maximum(-x, 0.0)
    )
    return jnp.mean(per_elem)


if __name__ == "__main__":
    key = jax.random.PRNGKey(0)
    k1, k2 = jax.random.split(key)

    B, C, H, W = 2, 4, 16, 16
    pos_weight = 2.13   # static constant, as in the module's __init__

    ypred = jax.random.normal(k1, (B, C, H, W), dtype=jnp.float32)
    ytgt = (jax.random.uniform(k2, (B, C, H, W)) > 0.5).astype(jnp.float32)

    loss = simple_loss(ypred, ytgt, pos_weight)
    loss = jax.block_until_ready(loss)
    ref = _simple_loss_ref(ypred, ytgt, pos_weight)
    assert jnp.allclose(loss, ref, rtol=1e-5, atol=1e-5), (loss, ref)

    # Extra shape coverage: (a) multi-tile + 2-core split + ragged last tile +
    # phantom trailing step (forced via a tiny block size), (b) the padded
    # fallback path (n with no multiple-of-128 divisor).
    k3, k4, k5, k6 = jax.random.split(jax.random.PRNGKey(1), 4)
    xa = jax.random.normal(k3, (2, 3, 40, 40), dtype=jnp.float32)
    ya = (jax.random.uniform(k4, (2, 3, 40, 40)) > 0.5).astype(jnp.float32)
    la = jax.block_until_ready(simple_loss(xa, ya, pos_weight, block_elems=2048))
    assert jnp.allclose(la, _simple_loss_ref(xa, ya, pos_weight),
                        rtol=1e-4, atol=1e-5), la

    xb = jax.random.normal(k5, (2, 3, 15, 15), dtype=jnp.float32)
    yb = (jax.random.uniform(k6, (2, 3, 15, 15)) > 0.5).astype(jnp.float32)
    lb = jax.block_until_ready(simple_loss(xb, yb, pos_weight))
    assert jnp.allclose(lb, _simple_loss_ref(xb, yb, pos_weight),
                        rtol=1e-4, atol=1e-5), lb

    print("KERNEL_OK")
</pallas_src>

<mosaic_0001>
module attributes {stable_mosaic.version = 11 : i64} {
  func.func @kernel(%arg0: i32, %arg1: i32, %arg2: memref<2x1024xf32, #tpu.memory_space<vmem>>, %arg3: memref<2x1024xf32, #tpu.memory_space<vmem>>, %arg4: memref<1x2x1024xf32, #tpu.memory_space<vmem>>) attributes {dimension_semantics = [#tpu.dimension_semantics<parallel>, #tpu.dimension_semantics<arbitrary>], iteration_bounds = array<i64: 1, 1>, scalar_prefetch = 0 : i64, scratch_operands = 0 : i64, tpu.core_type = #tpu.core_type<tc>, window_params = [{transform_indices = @transform_0, window_bounds = array<i64: 2, 1024>}, {transform_indices = @transform_1, window_bounds = array<i64: 2, 1024>}, {transform_indices = @transform_2, window_bounds = array<i64: 1, 2, 1024>}]} {
    %c0_i32 = arith.constant 0 : i32
    %0 = arith.cmpi eq, %arg1, %c0_i32 : i32
    %1 = arith.extui %0 : i1 to i32
    %c0_i32_0 = arith.constant 0 : i32
    %2 = arith.cmpi ne, %1, %c0_i32_0 : i32
    scf.if %2 {
      %cst_16 = arith.constant 0.000000e+00 : f32
      %32 = vector.broadcast %cst_16 : f32 to vector<2x1024xf32>
      %c0_17 = arith.constant 0 : index
      %c0_18 = arith.constant 0 : index
      %c0_19 = arith.constant 0 : index
      %33 = vector.load %arg4[%c0_17, %c0_18, %c0_19] : memref<1x2x1024xf32, #tpu.memory_space<vmem>>, vector<1x2x1024xf32>
      %34 = vector.shape_cast %33 : vector<1x2x1024xf32> to vector<2x1024xf32>
      %35 = vector.shape_cast %32 : vector<2x1024xf32> to vector<1x2x1024xf32>
      tpu.vector_store %arg4[%c0_17, %c0_18, %c0_19], %35 {strides = array<i32>} : memref<1x2x1024xf32, #tpu.memory_space<vmem>>, vector<1x2x1024xf32>,
    } else {
    }
    %c0 = arith.constant 0 : index
    %c0_1 = arith.constant 0 : index
    %3 = vector.load %arg2[%c0, %c0_1] : memref<2x1024xf32, #tpu.memory_space<vmem>>, vector<2x1024xf32>
    %c0_2 = arith.constant 0 : index
    %c0_3 = arith.constant 0 : index
    %4 = vector.load %arg3[%c0_2, %c0_3] : memref<2x1024xf32, #tpu.memory_space<vmem>>, vector<2x1024xf32>
    %cst = arith.constant 1.130000e+00 : f32
    %5 = vector.broadcast %cst : f32 to vector<2x1024xf32>
    %6 = arith.mulf %5, %4 : vector<2x1024xf32>
    %cst_4 = arith.constant 1.000000e+00 : f32
    %7 = vector.broadcast %cst_4 : f32 to vector<2x1024xf32>
    %8 = arith.addf %7, %6 : vector<2x1024xf32>
    %cst_5 = arith.constant 1.000000e+00 : f32
    %9 = vector.broadcast %cst_5 : f32 to vector<2x1024xf32>
    %10 = arith.subf %9, %4 : vector<2x1024xf32>
    %11 = arith.mulf %10, %3 : vector<2x1024xf32>
    %12 = math.absf %3 : vector<2x1024xf32>
    %cst_6 = arith.constant 0.000000e+00 : f32
    %13 = vector.broadcast %cst_6 : f32 to vector<2x1024xf32>
    %14 = arith.subf %13, %12 : vector<2x1024xf32>
    %15 = math.exp %14 : vector<2x1024xf32>
    %16 = math.log1p %15 : vector<2x1024xf32>
    %cst_7 = arith.constant 0.000000e+00 : f32
    %17 = vector.broadcast %cst_7 : f32 to vector<2x1024xf32>
    %18 = arith.subf %17, %3 : vector<2x1024xf32>
    %cst_8 = arith.constant 0.000000e+00 : f32
    %19 = vector.broadcast %cst_8 : f32 to vector<2x1024xf32>
    %20 = arith.maximumf %18, %19 : vector<2x1024xf32>
    %21 = arith.addf %16, %20 : vector<2x1024xf32>
    %22 = arith.mulf %8, %21 : vector<2x1024xf32>
    %23 = arith.addf %11, %22 : vector<2x1024xf32>
    %c0_9 = arith.constant 0 : index
    %c0_10 = arith.constant 0 : index
    %c0_11 = arith.constant 0 : index
    %24 = vector.load %arg4[%c0_9, %c0_10, %c0_11] : memref<1x2x1024xf32, #tpu.memory_space<vmem>>, vector<1x2x1024xf32>
    %25 = vector.shape_cast %24 : vector<1x2x1024xf32> to vector<2x1024xf32>
    %26 = vector.shape_cast %23 : vector<2x1024xf32> to vector<1x2x1024xf32>
    %cst_12 = arith.constant dense<0.000000e+00> : vector<2x1024xf32>
    %27 = vector.multi_reduction <add>, %26, %cst_12 [0] : vector<1x2x1024xf32> to vector<2x1024xf32>
    %28 = arith.addf %25, %27 : vector<2x1024xf32>
    %c0_13 = arith.constant 0 : index
    %c0_14 = arith.constant 0 : index
    %c0_15 = arith.constant 0 : index
    %29 = vector.load %arg4[%c0_13, %c0_14, %c0_15] : memref<1x2x1024xf32, #tpu.memory_space<vmem>>, vector<1x2x1024xf32>
    %30 = vector.shape_cast %29 : vector<1x2x1024xf32> to vector<2x1024xf32>
    %31 = vector.shape_cast %28 : vector<2x1024xf32> to vector<1x2x1024xf32>
    tpu.vector_store %arg4[%c0_13, %c0_14, %c0_15], %31 {strides = array<i32>} : memref<1x2x1024xf32, #tpu.memory_space<vmem>>, vector<1x2x1024xf32>,
    return
  }
  func.func @transform_0(%arg0: i32, %arg1: i32) -> (i32, i32) {
    %c1_i32 = arith.constant 1 : i32
    %0 = arith.muli %arg0, %c1_i32 : i32
    %1 = arith.addi %0, %arg1 : i32
    %c0_i32 = arith.constant 0 : i32
    %c0_i32_0 = arith.constant 0 : i32
    return %1, %c0_i32 : i32, i32
  }
  func.func @transform_1(%arg0: i32, %arg1: i32) -> (i32, i32) {
    %c1_i32 = arith.constant 1 : i32
    %0 = arith.muli %arg0, %c1_i32 : i32
    %1 = arith.addi %0, %arg1 : i32
    %c0_i32 = arith.constant 0 : i32
    %c0_i32_0 = arith.constant 0 : i32
    return %1, %c0_i32 : i32, i32
  }
  func.func @transform_2(%arg0: i32, %arg1: i32) -> (i32, i32, i32) {
    %c0_i32 = arith.constant 0 : i32
    %c0_i32_0 = arith.constant 0 : i32
    %c0_i32_1 = arith.constant 0 : i32
    return %arg0, %c0_i32, %c0_i32_0 : i32, i32, i32
  }
}

</mosaic_0001>

<llo_original>
// kernel: tpu_custom_call.1
$region0: #{tpu_custom_call.1}
  #allocation0 [shape = 'u32[]', space=smem, size = 0x4, offset = 0x4, fixed_abs, tag = 'smem constant byte address 0x4 - core index']
  #allocation1 [shape = 'u32[144,128]{1,0:T(1,128)}', space=vmem, size = 0x12000, scoped, tag = 'internal scratch']
  %s0 = inlined_call_operand.hbm [shape: f32[2,1024], index: 0, kind: input, shape index: {}]
  %s1 = inlined_call_operand.hbm [shape: f32[2,1024], index: 1, kind: input, shape index: {}]
  %s2 = inlined_call_operand.hbm [shape: f32[1,2,1024], index: 2, kind: output, shape index: {}]
  %s3 = sld [smem:[#allocation0]]
  $region30: #{tpu_custom_call.1} parent=0
    _
  %s5 = ssub.s32 1, %s3
  %s6 = scalar_select 0, %s5, %s3
  $region1: #{tpu_custom_call.1} parent=0
    #allocation2 [shape = 'u8[8192]{0}', space=vmem, size = 0x2000, scoped, tag = 'input window, operand 0, single buffered']
    #allocation3 [shape = 's32[1]{0}', space=sflag, size = 0x4, scoped, tag = 'scoped memory for tpu_custom_call.1']
    #allocation4 [shape = 's32[1]{0}', space=sflag, size = 0x4, scoped, tag = 'scoped memory for tpu_custom_call.1']
    #allocation5 [shape = 'u8[8192]{0}', space=vmem, size = 0x2000, scoped, tag = 'input window, operand 1, single buffered']
    #allocation6 [shape = 's32[1]{0}', space=sflag, size = 0x4, scoped, tag = 'scoped memory for tpu_custom_call.1']
    #allocation7 [shape = 'u8[8192]{0}', space=vmem, size = 0x2000, scoped, tag = 'output window, operand 0, single buffered']
    %7 = vsyncpa [#allocation3], 0
    %8 = vsyncpa [#allocation6], 0
    %9 = vsyncpa [#allocation4], 0
    // Predicated region
    $region2: #{tpu_custom_call.1} parent=1 // pred_check
      _
    $region3: #{tpu_custom_call.1} parent=1 // pred_check_branch
      %11 = sbr.rel (0) target = $region5
    $region4: #{tpu_custom_call.1} parent=1 // pred_region
      %s12 = sadd.s32 0, 0
      %s14 = ssub.s32 256, 256
      %15 = vsyncadd [#allocation3], %s14
      %s16 = smul.addr %s12, 8
      %s17 = smul.addr %s16, 32
      %s18 = scalar_lea.hbm %s0, %s17
      %s20 = sshll.u32 [#allocation2], 4
      %s21 = int_to_ptr.vmem [resolvable:$true] %s20
      %23 = dma.hbm_to_vmem [thread:$0]  %s18, 256, %s21, [#allocation3]
    $region5: #{tpu_custom_call.1} parent=1 // pred_fallthru
      _
    // Predicated region
    $region6: #{tpu_custom_call.1} parent=1 // pred_check
      _
    $region7: #{tpu_custom_call.1} parent=1 // pred_check_branch
      %25 = sbr.rel (0) target = $region9
    $region8: #{tpu_custom_call.1} parent=1 // pred_region
      %s26 = sadd.s32 0, 0
      %s28 = ssub.s32 256, 256
      %29 = vsyncadd [#allocation6], %s28
      %s30 = smul.addr %s26, 8
      %s31 = smul.addr %s30, 32
      %s32 = scalar_lea.hbm %s1, %s31
      %s34 = sshll.u32 [#allocation5], 4
      %s35 = int_to_ptr.vmem [resolvable:$true] %s34
      %37 = dma.hbm_to_vmem [thread:$0]  %s32, 256, %s35, [#allocation6]
    $region9: #{tpu_custom_call.1} parent=1 // pred_fallthru
      _
    // Predicated region
    $region10: #{tpu_custom_call.1} parent=1 // pred_check
      _
    $region11: #{tpu_custom_call.1} parent=1 // pred_check_branch
      %39 = sbr.rel (0) target = $region13
    $region12: #{tpu_custom_call.1} parent=1 // pred_region
      %40 = dma.done [#allocation3], 256
    $region13: #{tpu_custom_call.1} parent=1 // pred_fallthru
      _
    // Predicated region
    $region14: #{tpu_custom_call.1} parent=1 // pred_check
      _
    $region15: #{tpu_custom_call.1} parent=1 // pred_check_branch
      %42 = sbr.rel (0) target = $region17
    $region16: #{tpu_custom_call.1} parent=1 // pred_region
      %43 = dma.done [#allocation6], 256
    $region17: #{tpu_custom_call.1} parent=1 // pred_fallthru
      _
    %s44 = sadd.s32 0, 0
    %s45 = sadd.s32 0, 0
    %p46 = scmp.eq.s32.totalorder 0, 0
    // Predicated region
    $region18: #{tpu_custom_call.1} parent=1 // pred_check
      %p47 = pneg %p46
    $region19: #{tpu_custom_call.1} parent=1 // pred_check_branch
      %49 = sbr.rel (%p47) target = $region21
    $region20: #{tpu_custom_call.1} parent=1 // pred_region
      %50 = vst [vmem:[#allocation7] sm:$0xff] 0.0
      %51 = vst [vmem:[#allocation7 + $0x8] sm:$0xff] 0.0
    $region21: #{tpu_custom_call.1} parent=1 // pred_fallthru
      _
    %v52 = vld [vmem:[#allocation2] sm:$0xff]
    %v53 = vld [vmem:[#allocation2 + $0x8] sm:$0xff]
    %v54 = vld [vmem:[#allocation5] sm:$0xff]
    %v55 = vld [vmem:[#allocation5 + $0x8] sm:$0xff]
    %v56 = vmul.f32 %v54, 1.13
    %v57 = vmul.f32 %v55, 1.13
    %v58 = vadd.f32 %v56, 1.0
    %v59 = vadd.f32 %v57, 1.0
    %v60 = vsub.f32 1.0, %v54
    %v61 = vsub.f32 1.0, %v55
    %v62 = vmul.f32 %v60, %v52
    %v63 = vmul.f32 %v61, %v53
    %v64 = vand.u32 2147483647, %v52
    %v65 = vand.u32 2147483647, %v53
    %v66 = vsub.f32 0.0, %v64
    %v67 = vsub.f32 0.0, %v65
    %v68 = vmul.f32 %v66, 1.442695
    %v69 = vpow.pop %v68
    %v70 = vmul.f32 %v67, 1.442695
    %v71 = vpow.pop %v70
    %v72 = vadd.f32 %v69, 1.0
    %v73 = vlog2.pop %v72
    %v74 = vmul.f32 %v73, 0.6931472
    %v75 = vmul.f32 -0.5, %v69
    %v76 = vadd.f32 %v75, 1.0
    %v77 = vmul.f32 %v76, %v69
    %v78 = vand.u32 2147483647, %v69
    %vm79 = vcmp.lt.f32.partialorder %v78, 0.0004427343
    %v80 = vsel %vm79, %v77, %v74
    %v81 = vadd.f32 %v71, 1.0
    %v82 = vlog2.pop %v81
    %v83 = vmul.f32 %v82, 0.6931472
    %v84 = vmul.f32 -0.5, %v71
    %v85 = vadd.f32 %v84, 1.0
    %v86 = vmul.f32 %v85, %v71
    %v87 = vand.u32 2147483647, %v71
    %vm88 = vcmp.lt.f32.partialorder %v87, 0.0004427343
    %v89 = vsel %vm88, %v86, %v83
    %v90 = vsub.f32 0.0, %v52
    %v91 = vsub.f32 0.0, %v53
    %v92 = vmax.f32 %v90, 0.0
    %v93 = vmax.f32 %v91, 0.0
    %v94 = vadd.f32 %v80, %v92
    %v95 = vadd.f32 %v89, %v93
    %v96 = vmul.f32 %v58, %v94
    %v97 = vmul.f32 %v59, %v95
    %v98 = vadd.f32 %v62, %v96
    %v99 = vadd.f32 %v63, %v97
    %v100 = vld [vmem:[#allocation7] sm:$0xff]
    %v101 = vld [vmem:[#allocation7 + $0x8] sm:$0xff]
    %v102 = vadd.f32 %v98, 0.0
    %v103 = vadd.f32 %v99, 0.0
    %v104 = vadd.f32 %v100, %v102
    %v105 = vadd.f32 %v101, %v103
    %106 = vst [vmem:[#allocation7] sm:$0xff] %v104
    %107 = vst [vmem:[#allocation7 + $0x8] sm:$0xff] %v105
    // Predicated region
    $region22: #{tpu_custom_call.1} parent=1 // pred_check
      _
    $region23: #{tpu_custom_call.1} parent=1 // pred_check_branch
      %109 = sbr.rel (0) target = $region25
    $region24: #{tpu_custom_call.1} parent=1 // pred_region
      %s111 = ssub.s32 256, 256
      %112 = vsyncadd [#allocation4], %s111
      %s114 = sshll.u32 [#allocation7], 4
      %s115 = int_to_ptr.vmem [resolvable:$true] %s114
      %117 = dma.vmem_to_hbm [thread:$0]  %s115, 256, %s2, [#allocation4]
    $region25: #{tpu_custom_call.1} parent=1 // pred_fallthru
      _
    // Predicated region
    $region26: #{tpu_custom_call.1} parent=1 // pred_check
      _
    $region27: #{tpu_custom_call.1} parent=1 // pred_check_branch
      %119 = sbr.rel (0) target = $region29
    $region28: #{tpu_custom_call.1} parent=1 // pred_region
      %120 = dma.done [#allocation4], 256
    $region29: #{tpu_custom_call.1} parent=1 // pred_fallthru
      _
    %121 = vsyncpa [#allocation3], 1
    %122 = vsyncpa [#allocation6], 1
    %123 = vsyncpa [#allocation4], 1

</llo_original>
